<compile_context>
chip_gen: v5e
topology: v5e:2x2
jax: 0.10.0
libtpu: 0.0.40
codegen_flags: <defaults>
</compile_context>

<pallas_src>
import functools
import math

import jax
import jax.numpy as jnp
from jax.experimental import pallas as pl
from jax.experimental.pallas import tpu as pltpu

TM_MM = 256     # row tile for MXU matmul kernels
TM_EW = 1024    # row tile for memory-bound elementwise kernels (after lane folding)
TS_SM = 512     # spatial (lane) tile for the softmax kernel


# --------------------------------------------------------------------------- #
# Pallas kernels
# --------------------------------------------------------------------------- #
def _mm_kernel(x_ref, w_ref, b_ref, o_ref):
    y = jnp.dot(x_ref[...], w_ref[...], preferred_element_type=jnp.float32)
    o_ref[...] = y + b_ref[...]


def _mm_stats_kernel(x_ref, w_ref, b_ref, o_ref, st_ref, *, m_valid, tm):
    y = jnp.dot(x_ref[...], w_ref[...], preferred_element_type=jnp.float32)
    y = y + b_ref[...]
    o_ref[...] = y
    rows, n = y.shape
    ridx = jax.lax.broadcasted_iota(jnp.int32, (rows, 1), 0) + pl.program_id(0) * tm
    ym = jnp.where(ridx < m_valid, y, 0.0)          # mask out-of-range rows
    st_ref[0:1, :] = jnp.sum(ym, axis=0, keepdims=True)
    st_ref[1:2, :] = jnp.sum(ym * ym, axis=0, keepdims=True)
    st_ref[2:8, :] = jnp.zeros((6, n), jnp.float32)


def _sum_stats_kernel(x_ref, r_ref, st_ref, *, m_valid, tm):
    z = x_ref[...] + r_ref[...]
    rows, n = z.shape
    ridx = jax.lax.broadcasted_iota(jnp.int32, (rows, 1), 0) + pl.program_id(0) * tm
    zm = jnp.where(ridx < m_valid, z, 0.0)
    st_ref[0:1, :] = jnp.sum(zm, axis=0, keepdims=True)
    st_ref[1:2, :] = jnp.sum(zm * zm, axis=0, keepdims=True)
    st_ref[2:8, :] = jnp.zeros((6, n), jnp.float32)


def _apply_kernel(x_ref, s_ref, b_ref, *rest, relu, n_res, res_first):
    res_refs = rest[:n_res]
    o_ref = rest[n_res]
    x = x_ref[...]
    if res_first:                       # BN applied to (x + residual)  (decoder skips)
        for r in res_refs:
            x = x + r[...]
        y = x * s_ref[...] + b_ref[...]
    else:                               # residual added after BN       (section one)
        y = x * s_ref[...] + b_ref[...]
        for r in res_refs:
            y = y + r[...]
    if relu:
        y = jnp.maximum(y, 0.0)
    o_ref[...] = y


def _neg_softmax_kernel(x_ref, o_ref):
    v = -x_ref[...]                                    # (1, D, ts)
    m = jnp.max(v, axis=1, keepdims=True)
    e = jnp.exp(v - m)
    o_ref[...] = e / jnp.sum(e, axis=1, keepdims=True)


# --------------------------------------------------------------------------- #
# Pallas wrappers
# --------------------------------------------------------------------------- #
def _matmul_bias(x, w, b, want_stats):
    """x: [M, K], w: [K, N], b: [N] -> y [M, N] f32 (bf16 MXU, f32 accumulation).
    If want_stats, also returns per-channel (sum, sum-of-squares) of y."""
    m, k = x.shape
    n = w.shape[1]
    xb = x.astype(jnp.bfloat16)
    wb = w.astype(jnp.bfloat16)
    bf = b.reshape(1, n).astype(jnp.float32)
    tm = min(TM_MM, m)
    g = pl.cdiv(m, tm)
    cp = pltpu.CompilerParams(dimension_semantics=("parallel",))
    x_spec = pl.BlockSpec((tm, k), lambda i: (i, 0))
    w_spec = pl.BlockSpec((k, n), lambda i: (0, 0))
    b_spec = pl.BlockSpec((1, n), lambda i: (0, 0))
    y_spec = pl.BlockSpec((tm, n), lambda i: (i, 0))
    if not want_stats:
        y = pl.pallas_call(
            _mm_kernel,
            out_shape=jax.ShapeDtypeStruct((m, n), jnp.float32),
            grid=(g,),
            in_specs=[x_spec, w_spec, b_spec],
            out_specs=y_spec,
            compiler_params=cp,
        )(xb, wb, bf)
        return y, None
    y, st = pl.pallas_call(
        functools.partial(_mm_stats_kernel, m_valid=m, tm=tm),
        out_shape=(jax.ShapeDtypeStruct((m, n), jnp.float32),
                   jax.ShapeDtypeStruct((g * 8, n), jnp.float32)),
        grid=(g,),
        in_specs=[x_spec, w_spec, b_spec],
        out_specs=(y_spec, pl.BlockSpec((8, n), lambda i: (i, 0))),
        compiler_params=cp,
    )(xb, wb, bf)
    return y, (jnp.sum(st[0::8], axis=0), jnp.sum(st[1::8], axis=0))


def _fold_factor(m, c):
    """Lane-density fold: [M, 32/64] -> [M/f, 128] when M allows it."""
    if c in (32, 64) and m % (128 // c) == 0:
        return 128 // c
    return 1


@functools.partial(jax.jit, static_argnames=("relu", "res_first"))
def affine_apply(x2d, scale, bias, residuals=(), relu=True, res_first=False):
    """Fused BN-apply (+ residual add(s)) (+ ReLU) in a single lane-dense pass."""
    m, c = x2d.shape
    f = _fold_factor(m, c)
    mf, l = m // f, c * f
    xf = x2d.reshape(mf, l)
    rs = tuple(r.reshape(mf, l) for r in residuals)
    sf = jnp.tile(scale, f).reshape(1, l).astype(jnp.float32)
    bf = jnp.tile(bias, f).reshape(1, l).astype(jnp.float32)
    tm = min(TM_EW, mf)
    g = pl.cdiv(mf, tm)
    row_spec = pl.BlockSpec((tm, l), lambda i: (i, 0))
    vec_spec = pl.BlockSpec((1, l), lambda i: (0, 0))
    out = pl.pallas_call(
        functools.partial(_apply_kernel, relu=relu, n_res=len(rs), res_first=res_first),
        out_shape=jax.ShapeDtypeStruct((mf, l), jnp.float32),
        grid=(g,),
        in_specs=[row_spec, vec_spec, vec_spec] + [row_spec] * len(rs),
        out_specs=row_spec,
        compiler_params=pltpu.CompilerParams(dimension_semantics=("parallel",)),
    )(xf, sf, bf, *rs)
    return out.reshape(m, c)


@jax.jit
def sum_stats(x2d, r2d):
    """Per-channel sum and sum-of-squares of (x + r) in one read pass."""
    m, c = x2d.shape
    f = _fold_factor(m, c)
    mf, l = m // f, c * f
    xf, rf = x2d.reshape(mf, l), r2d.reshape(mf, l)
    tm = min(TM_EW, mf)
    g = pl.cdiv(mf, tm)
    row_spec = pl.BlockSpec((tm, l), lambda i: (i, 0))
    st = pl.pallas_call(
        functools.partial(_sum_stats_kernel, m_valid=mf, tm=tm),
        out_shape=jax.ShapeDtypeStruct((g * 8, l), jnp.float32),
        grid=(g,),
        in_specs=[row_spec, row_spec],
        out_specs=pl.BlockSpec((8, l), lambda i: (i, 0)),
        compiler_params=pltpu.CompilerParams(dimension_semantics=("parallel",)),
    )(xf, rf)
    s1 = jnp.sum(st[0::8], axis=0).reshape(f, c).sum(axis=0)
    s2 = jnp.sum(st[1::8], axis=0).reshape(f, c).sum(axis=0)
    return s1, s2


@jax.jit
def bn_scale_bias(s1, s2, count, gamma, beta):
    """Training-mode BatchNorm (batch statistics, biased variance, eps=1e-5)."""
    mean = s1 / count
    var = jnp.maximum(s2 / count - mean * mean, 0.0)
    scale = gamma * jax.lax.rsqrt(var + 1e-5)
    return scale, beta - mean * scale


@jax.jit
def neg_softmax_axis1(x):
    """softmax(-x, dim=1) for x: [B, D, H, W]; reduces over the sublane axis of
    the [B, D, H*W] view (no HBM transpose needed)."""
    bsz, d, h, w = x.shape
    hw = h * w
    xr = x.reshape(bsz, d, hw)
    ts = min(TS_SM, hw)
    out = pl.pallas_call(
        _neg_softmax_kernel,
        out_shape=jax.ShapeDtypeStruct((bsz, d, hw), jnp.float32),
        grid=(bsz, pl.cdiv(hw, ts)),
        in_specs=[pl.BlockSpec((1, d, ts), lambda i, j: (i, 0, j))],
        out_specs=pl.BlockSpec((1, d, ts), lambda i, j: (i, 0, j)),
        compiler_params=pltpu.CompilerParams(dimension_semantics=("parallel", "parallel")),
    )(xr)
    return out.reshape(bsz, d, h, w)


# --------------------------------------------------------------------------- #
# Conv wrappers (im2col glue in JAX, math in Pallas)
# --------------------------------------------------------------------------- #
@functools.partial(jax.jit, static_argnames=("stride", "pad", "want_stats"))
def conv2d_p(x, w, b, stride, pad, want_stats):
    """2-D conv (NHWC) as a bf16 im2col GEMM.  Returns (y, stats-or-None)."""
    kh, kw, cin, cout = w.shape
    bsz, h, wd, _ = x.shape
    xp = jnp.pad(x, ((0, 0), (pad, pad), (pad, pad), (0, 0))) if pad else x
    xp = xp.astype(jnp.bfloat16)
    ho = (h + 2 * pad - kh) // stride + 1
    wo = (wd + 2 * pad - kw) // stride + 1
    cols = [xp[:, i:i + stride * ho:stride, j:j + stride * wo:stride, :]
            for i in range(kh) for j in range(kw)]
    patches = jnp.concatenate(cols, axis=-1).reshape(bsz * ho * wo, kh * kw * cin)
    y, st = _matmul_bias(patches, w.reshape(kh * kw * cin, cout), b, want_stats)
    return y.reshape(bsz, ho, wo, cout), st


@functools.partial(jax.jit, static_argnames=("stride", "pad", "want_stats"))
def conv3d_p(x, w, b, stride, pad, want_stats):
    """3-D conv (NDHWC) as a bf16 im2col GEMM.  Returns (y, stats-or-None)."""
    kd, kh, kw, cin, cout = w.shape
    bsz, d, h, wd, _ = x.shape
    xp = jnp.pad(x, ((0, 0), (pad, pad), (pad, pad), (pad, pad), (0, 0))) if pad else x
    xp = xp.astype(jnp.bfloat16)
    do = (d + 2 * pad - kd) // stride + 1
    ho = (h + 2 * pad - kh) // stride + 1
    wo = (wd + 2 * pad - kw) // stride + 1
    cols = [xp[:, a:a + stride * do:stride,
               i:i + stride * ho:stride,
               j:j + stride * wo:stride, :]
            for a in range(kd) for i in range(kh) for j in range(kw)]
    patches = jnp.concatenate(cols, axis=-1).reshape(bsz * do * ho * wo, kd * kh * kw * cin)
    y, st = _matmul_bias(patches, w.reshape(kd * kh * kw * cin, cout), b, want_stats)
    return y.reshape(bsz, do, ho, wo, cout), st


# parity -> ((kernel tap index, input offset), ...) for k=3, stride=2, pad=1, op=1
_TAPS = {0: ((1, 0),), 1: ((0, 0), (2, 1))}


@jax.jit
def deconv3d_p(x, w_t, b):
    """ConvTranspose3d(k=3, s=2, p=1, output_padding=1) via sub-pixel
    decomposition: 8 small stride-1 GEMMs on the un-dilated input, interleaved
    into the 2x-upsampled output.  w_t: [Cin, Cout, 3, 3, 3] (PyTorch layout)."""
    cin, cout = w_t.shape[0], w_t.shape[1]
    w_eq = jnp.flip(w_t, axis=(2, 3, 4)).transpose(2, 3, 4, 0, 1)  # [3,3,3,Cin,Cout]
    bsz, d, h, wd, _ = x.shape
    xpad = jnp.pad(x, ((0, 0), (0, 1), (0, 1), (0, 1), (0, 0))).astype(jnp.bfloat16)
    m = bsz * d * h * wd
    ys = []
    for pd in (0, 1):
        for ph in (0, 1):
            for pw in (0, 1):
                taps = [(td, od, th, oh, tw, ow)
                        for (td, od) in _TAPS[pd]
                        for (th, oh) in _TAPS[ph]
                        for (tw, ow) in _TAPS[pw]]
                cols = [xpad[:, od:od + d, oh:oh + h, ow:ow + wd, :]
                        for (_, od, _, oh, _, ow) in taps]
                patches = jnp.concatenate(cols, axis=-1).reshape(m, len(taps) * cin)
                wk = jnp.concatenate(
                    [w_eq[td, th, tw] for (td, _, th, _, tw, _) in taps], axis=0)
                y, _ = _matmul_bias(patches, wk, b, want_stats=False)
                ys.append(y.reshape(bsz, d, h, wd, cout))
    out = jnp.stack(ys, axis=0).reshape(2, 2, 2, bsz, d, h, wd, cout)
    out = out.transpose(3, 4, 0, 5, 1, 6, 2, 7).reshape(bsz, 2 * d, 2 * h, 2 * wd, cout)
    return out


@functools.partial(jax.jit, static_argnames=("maxdisp",))
def cost_volume(imgl_f, imgr_f, maxdisp):
    # imgl_f/imgr_f: [B, H/2, W/2, 32] -> [B, D, H/2, W/2, 64]
    _, _, w2, _ = imgl_f.shape
    rights = [jnp.pad(imgr_f, ((0, 0), (0, 0), (dd, 0), (0, 0)))[:, :, :w2, :]
              for dd in range(maxdisp)]
    right = jnp.stack(rights, axis=1)
    left = jnp.broadcast_to(imgl_f[:, None], right.shape)
    return jnp.concatenate([left, right], axis=-1)


# --------------------------------------------------------------------------- #
# GCNet sections
# --------------------------------------------------------------------------- #
def _conv_bn_relu_2d(P, x, name, stride, pad):
    y, st = conv2d_p(x, P[name + "_w"], P[name + "_b"],
                     stride=stride, pad=pad, want_stats=True)
    c = y.shape[-1]
    cnt = math.prod(y.shape[:-1])
    sc, bi = bn_scale_bias(st[0], st[1], cnt, P[name + "_bn_g"], P[name + "_bn_b"])
    return affine_apply(y.reshape(-1, c), sc, bi, relu=True).reshape(y.shape)


def section_one(P, imgl, imgr):
    il = _conv_bn_relu_2d(P, imgl, "conv2d_0", 2, 2)
    ir = _conv_bn_relu_2d(P, imgr, "conv2d_0", 2, 2)
    outl, outr = il, ir
    for i in range(16):
        w, b = P[f"res_{i}_w"], P[f"res_{i}_b"]
        g, bb = P[f"res_{i}_bn_g"], P[f"res_{i}_bn_b"]
        if i % 2 == 0:
            yl, stl = conv2d_p(outl, w, b, stride=1, pad=1, want_stats=True)
            yr, strr = conv2d_p(outr, w, b, stride=1, pad=1, want_stats=True)
            c = yl.shape[-1]
            cnt = math.prod(yl.shape[:-1])
            scl, bil = bn_scale_bias(stl[0], stl[1], cnt, g, bb)
            scr, bir = bn_scale_bias(strr[0], strr[1], cnt, g, bb)
            outl = affine_apply(yl.reshape(-1, c), scl, bil, relu=True).reshape(yl.shape)
            outr = affine_apply(yr.reshape(-1, c), scr, bir, relu=True).reshape(yr.shape)
        else:
            # The reference overwrites the right tower with `outputl + imgr`
            # (quirk of the original code), so its odd-iteration conv/BN result
            # is dead work and is skipped here; forward outputs are unchanged.
            yl, stl = conv2d_p(outl, w, b, stride=1, pad=1, want_stats=True)
            c = yl.shape[-1]
            cnt = math.prod(yl.shape[:-1])
            scl, bil = bn_scale_bias(stl[0], stl[1], cnt, g, bb)
            yl2 = yl.reshape(-1, c)
            il2, ir2 = il.reshape(-1, c), ir.reshape(-1, c)
            outl = affine_apply(yl2, scl, bil, residuals=(il2,),
                                relu=True).reshape(yl.shape)
            outr = affine_apply(yl2, scl, bil, residuals=(il2, ir2),
                                relu=True).reshape(yl.shape)
            il, ir = outl, outr
    outl, _ = conv2d_p(outl, P["conv2d_1_w"], P["conv2d_1_b"],
                       stride=1, pad=1, want_stats=False)
    outr, _ = conv2d_p(outr, P["conv2d_1_w"], P["conv2d_1_b"],
                       stride=1, pad=1, want_stats=False)
    return outl, outr


def _conv_bn_relu_3d(P, x, name, stride):
    y, st = conv3d_p(x, P[name + "_w"], P[name + "_b"],
                     stride=stride, pad=1, want_stats=True)
    c = y.shape[-1]
    cnt = math.prod(y.shape[:-1])
    sc, bi = bn_scale_bias(st[0], st[1], cnt, P[name + "_bn_g"], P[name + "_bn_b"])
    return affine_apply(y.reshape(-1, c), sc, bi, relu=True).reshape(y.shape)


def _tconv_bn_relu(P, x, skip, name):
    dc = deconv3d_p(x, P[name + "_w"], P[name + "_b"])
    c = dc.shape[-1]
    dc2, sk2 = dc.reshape(-1, c), skip.reshape(-1, c)
    s1, s2 = sum_stats(dc2, sk2)                      # stats of (deconv + skip)
    sc, bi = bn_scale_bias(s1, s2, dc2.shape[0], P[name + "_bn_g"], P[name + "_bn_b"])
    z = affine_apply(dc2, sc, bi, residuals=(sk2,), relu=True, res_first=True)
    return z.reshape(dc.shape)


def section_three(P, cv):
    c3 = functools.partial(_conv_bn_relu_3d, P)
    x = c3(cv, "conv3d_0", 1)
    conv3d_20 = c3(x, "conv3d_1", 1)

    b1 = c3(cv, "conv3d_2", 2)
    b1 = c3(b1, "conv3d_3", 1)
    b1 = c3(b1, "conv3d_4", 1)

    c21 = c3(cv, "conv3d_14", 2)

    b2 = c3(c21, "conv3d_5", 2)
    b2 = c3(b2, "conv3d_6", 1)
    b2 = c3(b2, "conv3d_7", 1)

    c24 = c3(c21, "conv3d_15", 2)

    b3 = c3(c24, "conv3d_8", 2)
    b3 = c3(b3, "conv3d_9", 1)
    b3 = c3(b3, "conv3d_10", 1)

    c27 = c3(c24, "conv3d_15", 2)   # the reference reuses conv3d_15 / bn3d_15 here

    b4 = c3(c27, "conv3d_11", 2)
    b4 = c3(b4, "conv3d_12", 1)
    b4 = c3(b4, "conv3d_13", 1)

    d = _tconv_bn_relu(P, b4, b3, "Tconv3d_0")
    d = _tconv_bn_relu(P, d, b2, "Tconv3d_1")
    d = _tconv_bn_relu(P, d, b1, "Tconv3d_2")
    d = _tconv_bn_relu(P, d, conv3d_20, "Tconv3d_3")
    d = deconv3d_p(d, P["Tconv3d_4_w"], P["Tconv3d_4_b"])   # [B, 2D, H, W, 1]
    return d[..., 0]                                         # == .view(B, 2D, H, W)


def gcnet_forward(P, imgl, imgr, maxdisp):
    d_internal = maxdisp // 2
    l = jnp.transpose(imgl, (0, 2, 3, 1))   # NCHW -> NHWC
    r = jnp.transpose(imgr, (0, 2, 3, 1))
    fl, fr = section_one(P, l, r)
    cv = cost_volume(fl, fr, d_internal)    # [B, D, H/2, W/2, 64]
    out = section_three(P, cv)              # [B, 2D, H, W]
    return neg_softmax_axis1(out)           # softmax(-x, dim=1)


# --------------------------------------------------------------------------- #
# Deterministic parameter initialization (synthetic, matches module shapes)
# --------------------------------------------------------------------------- #
def init_params(key, channels):
    keys = jax.random.split(key, 256)
    it = iter(keys)
    P = {}

    def nk():
        return next(it)

    def conv2d_params(name, kh, kw, cin, cout):
        fan = kh * kw * cin
        P[name + "_w"] = (jax.random.normal(nk(), (kh, kw, cin, cout)) / math.sqrt(fan)).astype(jnp.float32)
        P[name + "_b"] = (0.01 * jax.random.normal(nk(), (cout,))).astype(jnp.float32)

    def conv3d_params(name, cin, cout):
        fan = 27 * cin
        P[name + "_w"] = (jax.random.normal(nk(), (3, 3, 3, cin, cout)) / math.sqrt(fan)).astype(jnp.float32)
        P[name + "_b"] = (0.01 * jax.random.normal(nk(), (cout,))).astype(jnp.float32)

    def tconv3d_params(name, cin, cout):
        fan = 27 * cin
        P[name + "_w"] = (jax.random.normal(nk(), (cin, cout, 3, 3, 3)) / math.sqrt(fan)).astype(jnp.float32)
        P[name + "_b"] = (0.01 * jax.random.normal(nk(), (cout,))).astype(jnp.float32)

    def bn_params(name, c):
        P[name + "_bn_g"] = jnp.ones((c,), jnp.float32)
        P[name + "_bn_b"] = jnp.zeros((c,), jnp.float32)

    # Section one
    conv2d_params("conv2d_0", 5, 5, channels, 32); bn_params("conv2d_0", 32)
    for i in range(16):
        conv2d_params(f"res_{i}", 3, 3, 32, 32); bn_params(f"res_{i}", 32)
    conv2d_params("conv2d_1", 3, 3, 32, 32)

    # Section three (conv3d_16 / bn3d_16 are defined but unused in the forward)
    conv3d_params("conv3d_0", 64, 32); bn_params("conv3d_0", 32)
    conv3d_params("conv3d_1", 32, 32); bn_params("conv3d_1", 32)
    for i in range(2, 11):
        conv3d_params(f"conv3d_{i}", 64, 64); bn_params(f"conv3d_{i}", 64)
    conv3d_params("conv3d_11", 64, 128); bn_params("conv3d_11", 128)
    conv3d_params("conv3d_12", 128, 128); bn_params("conv3d_12", 128)
    conv3d_params("conv3d_13", 128, 128); bn_params("conv3d_13", 128)
    conv3d_params("conv3d_14", 64, 64); bn_params("conv3d_14", 64)
    conv3d_params("conv3d_15", 64, 64); bn_params("conv3d_15", 64)
    tconv3d_params("Tconv3d_0", 128, 64); bn_params("Tconv3d_0", 64)
    tconv3d_params("Tconv3d_1", 64, 64); bn_params("Tconv3d_1", 64)
    tconv3d_params("Tconv3d_2", 64, 64); bn_params("Tconv3d_2", 64)
    tconv3d_params("Tconv3d_3", 64, 32); bn_params("Tconv3d_3", 32)
    tconv3d_params("Tconv3d_4", 32, 1)
    return P


# --------------------------------------------------------------------------- #
if __name__ == "__main__":
    # Smallest shapes compatible with the architecture: the cost-volume dims
    # (maxdisp/2, H/2, W/2) must be divisible by 16 for the encoder/decoder skips.
    B, C, H, W = 1, 3, 32, 32
    MAXDISP = 32

    key = jax.random.PRNGKey(0)
    kp, kl, kr = jax.random.split(key, 3)
    params = init_params(kp, C)
    imgl = jax.random.normal(kl, (B, C, H, W), jnp.float32)
    imgr = jax.random.normal(kr, (B, C, H, W), jnp.float32)

    prob = gcnet_forward(params, imgl, imgr, MAXDISP)
    prob = jax.block_until_ready(prob)

    assert prob.shape == (B, MAXDISP, H, W), prob.shape
    assert bool(jnp.all(jnp.isfinite(prob)))
    assert bool(jnp.allclose(jnp.sum(prob, axis=1), 1.0, atol=1e-3))
    print("KERNEL_OK")
</pallas_src>

<mosaic_0001>
module attributes {stable_mosaic.version = 11 : i64} {
  func.func @_mm_stats_kernel(%arg0: i32, %arg1: memref<256x75xbf16, #tpu.memory_space<vmem>>, %arg2: memref<75x32xbf16, #tpu.memory_space<vmem>>, %arg3: memref<1x32xf32, #tpu.memory_space<vmem>>, %arg4: memref<256x32xf32, #tpu.memory_space<vmem>>, %arg5: memref<8x32xf32, #tpu.memory_space<vmem>>) attributes {dimension_semantics = [#tpu.dimension_semantics<parallel>], iteration_bounds = array<i64: 1>, scalar_prefetch = 0 : i64, scratch_operands = 0 : i64, tpu.core_type = #tpu.core_type<tc>, window_params = [{transform_indices = @transform_0, window_bounds = array<i64: 256, 75>}, {pipeline_mode = #tpu.pipeline_mode<synchronous>, transform_indices = @transform_1, window_bounds = array<i64: 75, 32>}, {pipeline_mode = #tpu.pipeline_mode<synchronous>, transform_indices = @transform_2, window_bounds = array<i64: 1, 32>}, {transform_indices = @transform_3, window_bounds = array<i64: 256, 32>}, {transform_indices = @transform_4, window_bounds = array<i64: 8, 32>}]} {
    %c0 = arith.constant 0 : index
    %c0_0 = arith.constant 0 : index
    %0 = vector.load %arg1[%c0, %c0_0] : memref<256x75xbf16, #tpu.memory_space<vmem>>, vector<256x75xbf16>
    %c0_1 = arith.constant 0 : index
    %c0_2 = arith.constant 0 : index
    %1 = vector.load %arg2[%c0_1, %c0_2] : memref<75x32xbf16, #tpu.memory_space<vmem>>, vector<75x32xbf16>
    %cst = arith.constant dense<0.000000e+00> : vector<256x32xf32>
    %2 = tpu.matmul %0, %1, %cst {dimension_numbers = #tpu.dot_dimension_numbers<[1], [0], [0], [1], [0, 0, 1, 1], [], []>} : vector<256x75xbf16>, vector<75x32xbf16>, vector<256x32xf32> -> vector<256x32xf32>
    %c0_3 = arith.constant 0 : index
    %c0_4 = arith.constant 0 : index
    %3 = vector.load %arg3[%c0_3, %c0_4] : memref<1x32xf32, #tpu.memory_space<vmem>>, vector<1x32xf32>
    %4 = vector.broadcast %3 : vector<1x32xf32> to vector<256x32xf32>
    %5 = arith.addf %2, %4 : vector<256x32xf32>
    %c0_5 = arith.constant 0 : index
    %c0_6 = arith.constant 0 : index
    %6 = vector.load %arg4[%c0_5, %c0_6] : memref<256x32xf32, #tpu.memory_space<vmem>>, vector<256x32xf32>
    tpu.vector_store %arg4[%c0_5, %c0_6], %5 {strides = array<i32>} : memref<256x32xf32, #tpu.memory_space<vmem>>, vector<256x32xf32>,
    %7 = tpu.iota {dimensions = array<i32: 0>} : vector<256x1xi32>
    %c256_i32 = arith.constant 256 : i32
    %8 = arith.muli %arg0, %c256_i32 : i32
    %9 = vector.broadcast %8 : i32 to vector<256x1xi32>
    %10 = arith.addi %7, %9 : vector<256x1xi32>
    %c256_i32_7 = arith.constant 256 : i32
    %11 = vector.broadcast %c256_i32_7 : i32 to vector<256x1xi32>
    %12 = arith.cmpi slt, %10, %11 : vector<256x1xi32>
    %cst_8 = arith.constant 0.000000e+00 : f32
    %13 = vector.shape_cast %12 : vector<256x1xi1> to vector<256x1xi1>
    %14 = vector.broadcast %13 : vector<256x1xi1> to vector<256x32xi1>
    %15 = vector.broadcast %cst_8 : f32 to vector<256x32xf32>
    %16 = arith.select %14, %5, %15 : vector<256x32xi1>, vector<256x32xf32>
    %cst_9 = arith.constant dense<0.000000e+00> : vector<32xf32>
    %17 = vector.multi_reduction <add>, %16, %cst_9 [0] : vector<256x32xf32> to vector<32xf32>
    %18 = vector.shape_cast %17 : vector<32xf32> to vector<1x32xf32>
    %c0_10 = arith.constant 0 : index
    %c0_11 = arith.constant 0 : index
    %19 = vector.load %arg5[%c0_10, %c0_11] : memref<8x32xf32, #tpu.memory_space<vmem>>, vector<1x32xf32>
    tpu.vector_store %arg5[%c0_10, %c0_11], %18 {strides = array<i32>} : memref<8x32xf32, #tpu.memory_space<vmem>>, vector<1x32xf32>,
    %20 = arith.mulf %16, %16 : vector<256x32xf32>
    %cst_12 = arith.constant dense<0.000000e+00> : vector<32xf32>
    %21 = vector.multi_reduction <add>, %20, %cst_12 [0] : vector<256x32xf32> to vector<32xf32>
    %22 = vector.shape_cast %21 : vector<32xf32> to vector<1x32xf32>
    %c1 = arith.constant 1 : index
    %c0_13 = arith.constant 0 : index
    %23 = vector.load %arg5[%c1, %c0_13] : memref<8x32xf32, #tpu.memory_space<vmem>>, vector<1x32xf32>
    tpu.vector_store %arg5[%c1, %c0_13], %22 {strides = array<i32>} : memref<8x32xf32, #tpu.memory_space<vmem>>, vector<1x32xf32>,
    %cst_14 = arith.constant 0.000000e+00 : f32
    %24 = vector.broadcast %cst_14 : f32 to vector<6x32xf32>
    %c2 = arith.constant 2 : index
    %c0_15 = arith.constant 0 : index
    %25 = vector.load %arg5[%c2, %c0_15] : memref<8x32xf32, #tpu.memory_space<vmem>>, vector<6x32xf32>
    tpu.vector_store %arg5[%c2, %c0_15], %24 {strides = array<i32>} : memref<8x32xf32, #tpu.memory_space<vmem>>, vector<6x32xf32>,
    return
  }
  func.func @transform_0(%arg0: i32) -> (i32, i32) {
    %c0_i32 = arith.constant 0 : i32
    %c0_i32_0 = arith.constant 0 : i32
    return %arg0, %c0_i32 : i32, i32
  }
  func.func @transform_1(%arg0: i32) -> (i32, i32) {
    %c0_i32 = arith.constant 0 : i32
    %c0_i32_0 = arith.constant 0 : i32
    %c0_i32_1 = arith.constant 0 : i32
    return %c0_i32, %c0_i32_0 : i32, i32
  }
  func.func @transform_2(%arg0: i32) -> (i32, i32) {
    %c0_i32 = arith.constant 0 : i32
    %c0_i32_0 = arith.constant 0 : i32
    %c0_i32_1 = arith.constant 0 : i32
    return %c0_i32, %c0_i32_0 : i32, i32
  }
  func.func @transform_3(%arg0: i32) -> (i32, i32) {
    %c0_i32 = arith.constant 0 : i32
    %c0_i32_0 = arith.constant 0 : i32
    return %arg0, %c0_i32 : i32, i32
  }
  func.func @transform_4(%arg0: i32) -> (i32, i32) {
    %c0_i32 = arith.constant 0 : i32
    %c0_i32_0 = arith.constant 0 : i32
    return %arg0, %c0_i32 : i32, i32
  }
}

</mosaic_0001>

<llo_original>
// kernel: conv2d_p.1
$region0: #{conv2d_p.1}
  #allocation0 [shape = 'u32[]', space=smem, size = 0x4, offset = 0x4, fixed_abs, tag = 'smem constant byte address 0x4 - core index']
  #allocation1 [shape = 'u32[72,128]{1,0:T(1,128)}', space=vmem, size = 0x9000, scoped, tag = 'internal scratch']
  %s0 = inlined_call_operand.vmem [shape: bf16[256,75], index: 0, kind: input, shape index: {}]
  %s1 = inlined_call_operand.vmem [shape: bf16[75,32], index: 1, kind: input, shape index: {}]
  %s2 = inlined_call_operand.vmem [shape: f32[1,32], index: 2, kind: input, shape index: {}]
  %s3 = inlined_call_operand.hbm [shape: f32[256,32], index: 3, kind: output, shape index: {0}]
  %s4 = inlined_call_operand.vmem [shape: f32[8,32], index: 4, kind: output, shape index: {1}]
  %5 = xla_tuple %s3, %s4
  %s6 = sld [smem:[#allocation0]]
  $region30: #{conv2d_p.1} parent=0
    _
  %s8 = ssub.s32 1, %s6
  %s9 = scalar_select 0, %s8, %s6
  $region1: #{conv2d_p.1} parent=0
    #allocation2 [shape = 'u8[131072]{0}', space=vmem, size = 0x20000, scoped, tag = 'output window, operand 0, single buffered']
    #allocation3 [shape = 's32[1]{0}', space=sflag, size = 0x4, scoped, tag = 'scoped memory for conv2d_p.1']
    %10 = vsyncpa [#allocation3], 0
    // Predicated region
    $region2: #{conv2d_p.1} parent=1 // pred_check
      _
    $region3: #{conv2d_p.1} parent=1 // pred_check_branch
      %12 = sbr.rel (0) target = $region5
    $region4: #{conv2d_p.1} parent=1 // pred_region
      _
    $region5: #{conv2d_p.1} parent=1 // pred_fallthru
      _
    // Predicated region
    $region6: #{conv2d_p.1} parent=1 // pred_check
      _
    $region7: #{conv2d_p.1} parent=1 // pred_check_branch
      %14 = sbr.rel (0) target = $region9
    $region8: #{conv2d_p.1} parent=1 // pred_region
      _
    $region9: #{conv2d_p.1} parent=1 // pred_fallthru
      _
    // Predicated region
    $region10: #{conv2d_p.1} parent=1 // pred_check
      _
    $region11: #{conv2d_p.1} parent=1 // pred_check_branch
      %16 = sbr.rel (0) target = $region13
    $region12: #{conv2d_p.1} parent=1 // pred_region
      _
    $region13: #{conv2d_p.1} parent=1 // pred_fallthru
      _
    %v18 = vld [vmem:[%s0] sm:$0xf]
    %v19 = vld [vmem:[%s0 + $0x4] sm:$0xf]
    %v20 = vld [vmem:[%s0 + $0x8] sm:$0xf]
    %v21 = vld [vmem:[%s0 + $0xc] sm:$0xf]
    %v22 = vld [vmem:[%s0 + $0x10] sm:$0xf]
    %v23 = vld [vmem:[%s0 + $0x14] sm:$0xf]
    %v24 = vld [vmem:[%s0 + $0x18] sm:$0xf]
    %v25 = vld [vmem:[%s0 + $0x1c] sm:$0xf]
    %v26 = vld [vmem:[%s0 + $0x20] sm:$0xf]
    %v27 = vld [vmem:[%s0 + $0x24] sm:$0xf]
    %v28 = vld [vmem:[%s0 + $0x28] sm:$0xf]
    %v29 = vld [vmem:[%s0 + $0x2c] sm:$0xf]
    %v30 = vld [vmem:[%s0 + $0x30] sm:$0xf]
    %v31 = vld [vmem:[%s0 + $0x34] sm:$0xf]
    %v32 = vld [vmem:[%s0 + $0x38] sm:$0xf]
    %v33 = vld [vmem:[%s0 + $0x3c] sm:$0xf]
    %v34 = vld [vmem:[%s0 + $0x40] sm:$0xf]
    %v35 = vld [vmem:[%s0 + $0x44] sm:$0xf]
    %v36 = vld [vmem:[%s0 + $0x48] sm:$0xf]
    %v37 = vld [vmem:[%s0 + $0x4c] sm:$0xf]
    %v38 = vld [vmem:[%s0 + $0x50] sm:$0xf]
    %v39 = vld [vmem:[%s0 + $0x54] sm:$0xf]
    %v40 = vld [vmem:[%s0 + $0x58] sm:$0xf]
    %v41 = vld [vmem:[%s0 + $0x5c] sm:$0xf]
    %v42 = vld [vmem:[%s0 + $0x60] sm:$0xf]
    %v43 = vld [vmem:[%s0 + $0x64] sm:$0xf]
    %v44 = vld [vmem:[%s0 + $0x68] sm:$0xf]
    %v45 = vld [vmem:[%s0 + $0x6c] sm:$0xf]
    %v46 = vld [vmem:[%s0 + $0x70] sm:$0xf]
    %v47 = vld [vmem:[%s0 + $0x74] sm:$0xf]
    %v48 = vld [vmem:[%s0 + $0x78] sm:$0xf]
    %v49 = vld [vmem:[%s0 + $0x7c] sm:$0xf]
    %v50 = vld [vmem:[%s1] sm:$0xf]
    %v51 = vld [vmem:[%s1 + $0x4] sm:$0xf]
    %v52 = vld [vmem:[%s1 + $0x8] sm:$0xf]
    %v53 = vld [vmem:[%s1 + $0xc] sm:$0xf]
    %v54 = vld [vmem:[%s1 + $0x10] sm:$0xf]
    %v55 = vld [vmem:[%s1 + $0x14] sm:$0xf]
    %v56 = vld [vmem:[%s1 + $0x18] sm:$0xf]
    %v57 = vld [vmem:[%s1 + $0x1c] sm:$0xf]
    %v58 = vld [vmem:[%s1 + $0x20] sm:$0xf]
    %v59 = vld [vmem:[%s1 + $0x24] sm:$0x3]
    %v60 = vld [vmem:[%s2] sm:$0x1]
    %v62 = vperm.slane %v60, 0
    %v96 = vunpack.c.l.b16 %v18
    %v97 = vunpack.c.l.b16 %v19
    %v98 = vunpack.c.l.b16 %v20
    %v99 = vunpack.c.l.b16 %v21
    %v100 = vunpack.c.l.b16 %v22
    %v101 = vunpack.c.l.b16 %v23
    %v102 = vunpack.c.l.b16 %v24
    %v103 = vunpack.c.l.b16 %v25
    %v104 = vunpack.c.l.b16 %v26
    %v105 = vunpack.c.l.b16 %v27
    %v106 = vunpack.c.l.b16 %v28
    %v107 = vunpack.c.l.b16 %v29
    %v108 = vunpack.c.l.b16 %v30
    %v109 = vunpack.c.l.b16 %v31
    %v110 = vunpack.c.l.b16 %v32
    %v111 = vunpack.c.l.b16 %v33
    %v112 = vunpack.c.l.b16 %v34
    %v113 = vunpack.c.l.b16 %v35
    %v114 = vunpack.c.l.b16 %v36
    %v115 = vunpack.c.l.b16 %v37
    %v116 = vunpack.c.l.b16 %v38
    %v117 = vunpack.c.l.b16 %v39
    %v118 = vunpack.c.l.b16 %v40
    %v119 = vunpack.c.l.b16 %v41
    %v120 = vunpack.c.l.b16 %v42
    %v121 = vunpack.c.l.b16 %v43
    %v122 = vunpack.c.l.b16 %v44
    %v123 = vunpack.c.l.b16 %v45
    %v124 = vunpack.c.l.b16 %v46
    %v125 = vunpack.c.l.b16 %v47
    %v126 = vunpack.c.l.b16 %v48
    %v127 = vunpack.c.l.b16 %v49
    %v128 = vpack.c.b16 %v97, %v96
    %v129 = vpack.c.b16 %v99, %v98
    %v130 = vpack.c.b16 %v101, %v100
    %v131 = vpack.c.b16 %v103, %v102
    %v132 = vpack.c.b16 %v105, %v104
    %v133 = vpack.c.b16 %v107, %v106
    %v134 = vpack.c.b16 %v109, %v108
    %v135 = vpack.c.b16 %v111, %v110
    %v136 = vpack.c.b16 %v113, %v112
    %v137 = vpack.c.b16 %v115, %v114
    %v138 = vpack.c.b16 %v117, %v116
    %v139 = vpack.c.b16 %v119, %v118
    %v140 = vpack.c.b16 %v121, %v120
    %v141 = vpack.c.b16 %v123, %v122
    %v142 = vpack.c.b16 %v125, %v124
    %v143 = vpack.c.b16 %v127, %v126
    %v154 = vunpack.c.l.b16 %v50
    %v155 = vunpack.c.l.b16 %v51
    %v156 = vunpack.c.l.b16 %v52
    %v157 = vunpack.c.l.b16 %v53
    %v158 = vunpack.c.l.b16 %v54
    %v159 = vunpack.c.l.b16 %v55
    %v160 = vunpack.c.l.b16 %v56
    %v161 = vunpack.c.l.b16 %v57
    %v162 = vunpack.c.l.b16 %v58
    %v163 = vunpack.c.l.b16 %v59
    %v164 = vpack.c.b16 %v155, %v154
    %v165 = vpack.c.b16 %v157, %v156
    %v166 = vpack.c.b16 %v159, %v158
    %v167 = vpack.c.b16 %v161, %v160
    %v168 = vpack.c.b16 %v163, %v162
    %vm173 = vcmask 613376
    %v175 = vsel %vm173, %v128, 0
    %v178 = vsel %vm173, %v129, 0
    %v181 = vsel %vm173, %v130, 0
    %v184 = vsel %vm173, %v131, 0
    %v187 = vsel %vm173, %v132, 0
    %v190 = vsel %vm173, %v133, 0
    %v193 = vsel %vm173, %v134, 0
    %v196 = vsel %vm173, %v135, 0
    %v199 = vsel %vm173, %v136, 0
    %v202 = vsel %vm173, %v137, 0
    %v205 = vsel %vm173, %v138, 0
    %v208 = vsel %vm173, %v139, 0
    %v211 = vsel %vm173, %v140, 0
    %v214 = vsel %vm173, %v141, 0
    %v217 = vsel %vm173, %v142, 0
    %v220 = vsel %vm173, %v143, 0
    %vm222 = vcmask 1044480
    %vm223 = vcmask 1045504
    %v224 = vsel %vm222, 4294967295, 65535
    %v225 = vsel %vm223, %v224, 0
    %v227 = vand.u32 %v168, %v225
    %229 = vmatpush.bf16.msra.mxu0 0
    %230 = vmatpush.bf16.msra.mxu0 0
    %231 = vmatpush.bf16.msra.mxu0 0
    %232 = vmatpush.bf16.msra.mxu0 %v227
    %233 = vmatpush.bf16.msra.mxu0 %v167
    %234 = vmatpush.bf16.msra.mxu0 %v166
    %235 = vmatpush.bf16.msra.mxu0 %v165
    %236 = vmatpush.bf16.msra.mxu0 %v164
    %237 = vmatmul.bf16.gmra.mxu0 %v175
    %v238 = vpop.f32.mrf.mxu0
    %v239 = vadd.f32 %v62, %v238
    %v240 = vpop.f32.mrf.mxu0
    %v241 = vadd.f32 %v62, %v240
    %242 = vmatmul.bf16.gmra.mxu0 %v178
    %v243 = vpop.f32.mrf.mxu0
    %v244 = vadd.f32 %v62, %v243
    %v245 = vpop.f32.mrf.mxu0
    %v246 = vadd.f32 %v62, %v245
    %247 = vmatmul.bf16.gmra.mxu0 %v181
    %v248 = vpop.f32.mrf.mxu0
    %v249 = vadd.f32 %v62, %v248
    %v250 = vpop.f32.mrf.mxu0
    %v251 = vadd.f32 %v62, %v250
    %252 = vmatmul.bf16.gmra.mxu0 %v184
    %v253 = vpop.f32.mrf.mxu0
    %v254 = vadd.f32 %v62, %v253
    %v255 = vpop.f32.mrf.mxu0
    %v256 = vadd.f32 %v62, %v255
    %257 = vmatmul.bf16.gmra.mxu0 %v187
    %v258 = vpop.f32.mrf.mxu0
    %v259 = vadd.f32 %v62, %v258
    %v260 = vpop.f32.mrf.mxu0
    %v261 = vadd.f32 %v62, %v260
    %262 = vmatmul.bf16.gmra.mxu0 %v190
    %v263 = vpop.f32.mrf.mxu0
    %v264 = vadd.f32 %v62, %v263
    %v265 = vpop.f32.mrf.mxu0
    %v266 = vadd.f32 %v62, %v265
    %267 = vmatmul.bf16.gmra.mxu0 %v193
    %v268 = vpop.f32.mrf.mxu0
    %v269 = vadd.f32 %v62, %v268
    %v270 = vpop.f32.mrf.mxu0
    %v271 = vadd.f32 %v62, %v270
    %272 = vmatmul.bf16.gmra.mxu0 %v196
    %v273 = vpop.f32.mrf.mxu0
    %v274 = vadd.f32 %v62, %v273
    %v275 = vpop.f32.mrf.mxu0
    %v276 = vadd.f32 %v62, %v275
    %277 = vmatmul.bf16.gmra.mxu0 %v199
    %v278 = vpop.f32.mrf.mxu0
    %v279 = vadd.f32 %v62, %v278
    %v280 = vpop.f32.mrf.mxu0
    %v281 = vadd.f32 %v62, %v280
    %282 = vmatmul.bf16.gmra.mxu0 %v202
    %v283 = vpop.f32.mrf.mxu0
    %v284 = vadd.f32 %v62, %v283
    %v285 = vpop.f32.mrf.mxu0
    %v286 = vadd.f32 %v62, %v285
    %287 = vmatmul.bf16.gmra.mxu0 %v205
    %v288 = vpop.f32.mrf.mxu0
    %v289 = vadd.f32 %v62, %v288
    %v290 = vpop.f32.mrf.mxu0
    %v291 = vadd.f32 %v62, %v290
    %292 = vmatmul.bf16.gmra.mxu0 %v208
    %v293 = vpop.f32.mrf.mxu0
    %v294 = vadd.f32 %v62, %v293
    %v295 = vpop.f32.mrf.mxu0
    %v296 = vadd.f32 %v62, %v295
    %297 = vmatmul.bf16.gmra.mxu0 %v211
    %v298 = vpop.f32.mrf.mxu0
    %v299 = vadd.f32 %v62, %v298
    %v300 = vpop.f32.mrf.mxu0
    %v301 = vadd.f32 %v62, %v300
    %302 = vmatmul.bf16.gmra.mxu0 %v214
    %v303 = vpop.f32.mrf.mxu0
    %v304 = vadd.f32 %v62, %v303
    %v305 = vpop.f32.mrf.mxu0
    %v306 = vadd.f32 %v62, %v305
    %307 = vmatmul.bf16.gmra.mxu0 %v217
    %v308 = vpop.f32.mrf.mxu0
    %v309 = vadd.f32 %v62, %v308
    %v310 = vpop.f32.mrf.mxu0
    %v311 = vadd.f32 %v62, %v310
    %312 = vmatmul.bf16.gmra.mxu0 %v220
    %v313 = vpop.f32.mrf.mxu0
    %v314 = vadd.f32 %v62, %v313
    %v315 = vpop.f32.mrf.mxu0
    %v316 = vadd.f32 %v62, %v315
    %317 = vdwg.mxu0
    %vm318 = vcmask 261120
    %319 = vst.msk [vmem:[#allocation2] sm:$0xff] %vm318, %v239
    %320 = vst.msk [vmem:[#allocation2 + $0x8] sm:$0xff] %vm318, %v241
    %321 = vst.msk [vmem:[#allocation2 + $0x10] sm:$0xff] %vm318, %v244
    %322 = vst.msk [vmem:[#allocation2 + $0x18] sm:$0xff] %vm318, %v246
    %323 = vst.msk [vmem:[#allocation2 + $0x20] sm:$0xff] %vm318, %v249
    %324 = vst.msk [vmem:[#allocation2 + $0x28] sm:$0xff] %vm318, %v251
    %325 = vst.msk [vmem:[#allocation2 + $0x30] sm:$0xff] %vm318, %v254
    %326 = vst.msk [vmem:[#allocation2 + $0x38] sm:$0xff] %vm318, %v256
    %327 = vst.msk [vmem:[#allocation2 + $0x40] sm:$0xff] %vm318, %v259
    %328 = vst.msk [vmem:[#allocation2 + $0x48] sm:$0xff] %vm318, %v261
    %329 = vst.msk [vmem:[#allocation2 + $0x50] sm:$0xff] %vm318, %v264
    %330 = vst.msk [vmem:[#allocation2 + $0x58] sm:$0xff] %vm318, %v266
    %331 = vst.msk [vmem:[#allocation2 + $0x60] sm:$0xff] %vm318, %v269
    %332 = vst.msk [vmem:[#allocation2 + $0x68] sm:$0xff] %vm318, %v271
    %333 = vst.msk [vmem:[#allocation2 + $0x70] sm:$0xff] %vm318, %v274
    %334 = vst.msk [vmem:[#allocation2 + $0x78] sm:$0xff] %vm318, %v276
    %335 = vst.msk [vmem:[#allocation2 + $0x80] sm:$0xff] %vm318, %v279
    %336 = vst.msk [vmem:[#allocation2 + $0x88] sm:$0xff] %vm318, %v281
    %337 = vst.msk [vmem:[#allocation2 + $0x90] sm:$0xff] %vm318, %v284
    %338 = vst.msk [vmem:[#allocation2 + $0x98] sm:$0xff] %vm318, %v286
    %339 = vst.msk [vmem:[#allocation2 + $0xa0] sm:$0xff] %vm318, %v289
    %340 = vst.msk [vmem:[#allocation2 + $0xa8] sm:$0xff] %vm318, %v291
    %341 = vst.msk [vmem:[#allocation2 + $0xb0] sm:$0xff] %vm318, %v294
    %342 = vst.msk [vmem:[#allocation2 + $0xb8] sm:$0xff] %vm318, %v296
    %343 = vst.msk [vmem:[#allocation2 + $0xc0] sm:$0xff] %vm318, %v299
    %344 = vst.msk [vmem:[#allocation2 + $0xc8] sm:$0xff] %vm318, %v301
    %345 = vst.msk [vmem:[#allocation2 + $0xd0] sm:$0xff] %vm318, %v304
    %346 = vst.msk [vmem:[#allocation2 + $0xd8] sm:$0xff] %vm318, %v306
    %347 = vst.msk [vmem:[#allocation2 + $0xe0] sm:$0xff] %vm318, %v309
    %348 = vst.msk [vmem:[#allocation2 + $0xe8] sm:$0xff] %vm318, %v311
    %349 = vst.msk [vmem:[#allocation2 + $0xf0] sm:$0xff] %vm318, %v314
    %350 = vst.msk [vmem:[#allocation2 + $0xf8] sm:$0xff] %vm318, %v316
    %v351 = vlaneseq
    %v352 = vshrl.u32 %v351, 7
    %v353 = vadd.s32 %v352, 8
    %v354 = vadd.s32 %v352, 16
    %v355 = vadd.s32 %v352, 24
    %v356 = vadd.s32 %v352, 32
    %v357 = vadd.s32 %v352, 40
    %v358 = vadd.s32 %v352, 48
    %v359 = vadd.s32 %v352, 56
    %v360 = vadd.s32 %v352, 64
    %v361 = vadd.s32 %v352, 72
    %v362 = vadd.s32 %v352, 80
    %v363 = vadd.s32 %v352, 88
    %v364 = vadd.s32 %v352, 96
    %v365 = vadd.s32 %v352, 104
    %v366 = vadd.s32 %v352, 112
    %v367 = vadd.s32 %v352, 120
    %v368 = vadd.s32 %v352, 128
    %v369 = vadd.s32 %v352, 136
    %v370 = vadd.s32 %v352, 144
    %v371 = vadd.s32 %v352, 152
    %v372 = vadd.s32 %v352, 160
    %v373 = vadd.s32 %v352, 168
    %v374 = vadd.s32 %v352, 176
    %v375 = vadd.s32 %v352, 184
    %v376 = vadd.s32 %v352, 192
    %v377 = vadd.s32 %v352, 200
    %v378 = vadd.s32 %v352, 208
    %v379 = vadd.s32 %v352, 216
    %v380 = vadd.s32 %v352, 224
    %v381 = vadd.s32 %v352, 232
    %v382 = vadd.s32 %v352, 240
    %v383 = vadd.s32 %v352, 248
    %s384 = smul.u32 0, 256
    %v385 = vstv %s384
    %v386 = vadd.s32 %v352, %v385
    %v387 = vadd.s32 %v353, %v385
    %v388 = vadd.s32 %v354, %v385
    %v389 = vadd.s32 %v355, %v385
    %v390 = vadd.s32 %v356, %v385
    %v391 = vadd.s32 %v357, %v385
    %v392 = vadd.s32 %v358, %v385
    %v393 = vadd.s32 %v359, %v385
    %v394 = vadd.s32 %v360, %v385
    %v395 = vadd.s32 %v361, %v385
    %v396 = vadd.s32 %v362, %v385
    %v397 = vadd.s32 %v363, %v385
    %v398 = vadd.s32 %v364, %v385
    %v399 = vadd.s32 %v365, %v385
    %v400 = vadd.s32 %v366, %v385
    %v401 = vadd.s32 %v367, %v385
    %v402 = vadd.s32 %v368, %v385
    %v403 = vadd.s32 %v369, %v385
    %v404 = vadd.s32 %v370, %v385
    %v405 = vadd.s32 %v371, %v385
    %v406 = vadd.s32 %v372, %v385
    %v407 = vadd.s32 %v373, %v385
    %v408 = vadd.s32 %v374, %v385
    %v409 = vadd.s32 %v375, %v385
    %v410 = vadd.s32 %v376, %v385
    %v411 = vadd.s32 %v377, %v385
    %v412 = vadd.s32 %v378, %v385
    %v413 = vadd.s32 %v379, %v385
    %v414 = vadd.s32 %v380, %v385
    %v415 = vadd.s32 %v381, %v385
    %v416 = vadd.s32 %v382, %v385
    %v417 = vadd.s32 %v383, %v385
    %vm418 = vcmp.lt.s32.totalorder %v386, 256
    %vm419 = vcmp.lt.s32.totalorder %v387, 256
    %vm420 = vcmp.lt.s32.totalorder %v388, 256
    %vm421 = vcmp.lt.s32.totalorder %v389, 256
    %vm422 = vcmp.lt.s32.totalorder %v390, 256
    %vm423 = vcmp.lt.s32.totalorder %v391, 256
    %vm424 = vcmp.lt.s32.totalorder %v392, 256
    %vm425 = vcmp.lt.s32.totalorder %v393, 256
    %vm426 = vcmp.lt.s32.totalorder %v394, 256
    %vm427 = vcmp.lt.s32.totalorder %v395, 256
    %vm428 = vcmp.lt.s32.totalorder %v396, 256
    %vm429 = vcmp.lt.s32.totalorder %v397, 256
    %vm430 = vcmp.lt.s32.totalorder %v398, 256
    %vm431 = vcmp.lt.s32.totalorder %v399, 256
    %vm432 = vcmp.lt.s32.totalorder %v400, 256
    %vm433 = vcmp.lt.s32.totalorder %v401, 256
    %vm434 = vcmp.lt.s32.totalorder %v402, 256
    %vm435 = vcmp.lt.s32.totalorder %v403, 256
    %vm436 = vcmp.lt.s32.totalorder %v404, 256
    %vm437 = vcmp.lt.s32.totalorder %v405, 256
    %vm438 = vcmp.lt.s32.totalorder %v406, 256
    %vm439 = vcmp.lt.s32.totalorder %v407, 256
    %vm440 = vcmp.lt.s32.totalorder %v408, 256
    %vm441 = vcmp.lt.s32.totalorder %v409, 256
    %vm442 = vcmp.lt.s32.totalorder %v410, 256
    %vm443 = vcmp.lt.s32.totalorder %v411, 256
    %vm444 = vcmp.lt.s32.totalorder %v412, 256
    %vm445 = vcmp.lt.s32.totalorder %v413, 256
    %vm446 = vcmp.lt.s32.totalorder %v414, 256
    %vm447 = vcmp.lt.s32.totalorder %v415, 256
    %vm448 = vcmp.lt.s32.totalorder %v416, 256
    %vm449 = vcmp.lt.s32.totalorder %v417, 256
    %v450 = vsel %vm418, 1, 0
    %v451 = vsel %vm419, 1, 0
    %v452 = vsel %vm420, 1, 0
    %v453 = vsel %vm421, 1, 0
    %v454 = vsel %vm422, 1, 0
    %v455 = vsel %vm423, 1, 0
    %v456 = vsel %vm424, 1, 0
    %v457 = vsel %vm425, 1, 0
    %v458 = vsel %vm426, 1, 0
    %v459 = vsel %vm427, 1, 0
    %v460 = vsel %vm428, 1, 0
    %v461 = vsel %vm429, 1, 0
    %v462 = vsel %vm430, 1, 0
    %v463 = vsel %vm431, 1, 0
    %v464 = vsel %vm432, 1, 0
    %v465 = vsel %vm433, 1, 0
    %v466 = vsel %vm434, 1, 0
    %v467 = vsel %vm435, 1, 0
    %v468 = vsel %vm436, 1, 0
    %v469 = vsel %vm437, 1, 0
    %v470 = vsel %vm438, 1, 0
    %v471 = vsel %vm439, 1, 0
    %v472 = vsel %vm440, 1, 0
    %v473 = vsel %vm441, 1, 0
    %v474 = vsel %vm442, 1, 0
    %v475 = vsel %vm443, 1, 0
    %v476 = vsel %vm444, 1, 0
    %v477 = vsel %vm445, 1, 0
    %v478 = vsel %vm446, 1, 0
    %v479 = vsel %vm447, 1, 0
    %v480 = vsel %vm448, 1, 0
    %v481 = vsel %vm449, 1, 0
    %vm482 = vcmp.eq.s32.totalorder %v450, 1
    %vm483 = vcmp.eq.s32.totalorder %v451, 1
    %vm484 = vcmp.eq.s32.totalorder %v452, 1
    %vm485 = vcmp.eq.s32.totalorder %v453, 1
    %vm486 = vcmp.eq.s32.totalorder %v454, 1
    %vm487 = vcmp.eq.s32.totalorder %v455, 1
    %vm488 = vcmp.eq.s32.totalorder %v456, 1
    %vm489 = vcmp.eq.s32.totalorder %v457, 1
    %vm490 = vcmp.eq.s32.totalorder %v458, 1
    %vm491 = vcmp.eq.s32.totalorder %v459, 1
    %vm492 = vcmp.eq.s32.totalorder %v460, 1
    %vm493 = vcmp.eq.s32.totalorder %v461, 1
    %vm494 = vcmp.eq.s32.totalorder %v462, 1
    %vm495 = vcmp.eq.s32.totalorder %v463, 1
    %vm496 = vcmp.eq.s32.totalorder %v464, 1
    %vm497 = vcmp.eq.s32.totalorder %v465, 1
    %vm498 = vcmp.eq.s32.totalorder %v466, 1
    %vm499 = vcmp.eq.s32.totalorder %v467, 1
    %vm500 = vcmp.eq.s32.totalorder %v468, 1
    %vm501 = vcmp.eq.s32.totalorder %v469, 1
    %vm502 = vcmp.eq.s32.totalorder %v470, 1
    %vm503 = vcmp.eq.s32.totalorder %v471, 1
    %vm504 = vcmp.eq.s32.totalorder %v472, 1
    %vm505 = vcmp.eq.s32.totalorder %v473, 1
    %vm506 = vcmp.eq.s32.totalorder %v474, 1
    %vm507 = vcmp.eq.s32.totalorder %v475, 1
    %vm508 = vcmp.eq.s32.totalorder %v476, 1
    %vm509 = vcmp.eq.s32.totalorder %v477, 1
    %vm510 = vcmp.eq.s32.totalorder %v478, 1
    %vm511 = vcmp.eq.s32.totalorder %v479, 1
    %vm512 = vcmp.eq.s32.totalorder %v480, 1
    %vm513 = vcmp.eq.s32.totalorder %v481, 1
    %v514 = vsel %vm482, %v239, 0.0
    %v515 = vsel %vm483, %v241, 0.0
    %v516 = vsel %vm484, %v244, 0.0
    %v517 = vsel %vm485, %v246, 0.0
    %v518 = vsel %vm486, %v249, 0.0
    %v519 = vsel %vm487, %v251, 0.0
    %v520 = vsel %vm488, %v254, 0.0
    %v521 = vsel %vm489, %v256, 0.0
    %v522 = vsel %vm490, %v259, 0.0
    %v523 = vsel %vm491, %v261, 0.0
    %v524 = vsel %vm492, %v264, 0.0
    %v525 = vsel %vm493, %v266, 0.0
    %v526 = vsel %vm494, %v269, 0.0
    %v527 = vsel %vm495, %v271, 0.0
    %v528 = vsel %vm496, %v274, 0.0
    %v529 = vsel %vm497, %v276, 0.0
    %v530 = vsel %vm498, %v279, 0.0
    %v531 = vsel %vm499, %v281, 0.0
    %v532 = vsel %vm500, %v284, 0.0
    %v533 = vsel %vm501, %v286, 0.0
    %v534 = vsel %vm502, %v289, 0.0
    %v535 = vsel %vm503, %v291, 0.0
    %v536 = vsel %vm504, %v294, 0.0
    %v537 = vsel %vm505, %v296, 0.0
    %v538 = vsel %vm506, %v299, 0.0
    %v539 = vsel %vm507, %v301, 0.0
    %v540 = vsel %vm508, %v304, 0.0
    %v541 = vsel %vm509, %v306, 0.0
    %v542 = vsel %vm510, %v309, 0.0
    %v543 = vsel %vm511, %v311, 0.0
    %v544 = vsel %vm512, %v314, 0.0
    %v545 = vsel %vm513, %v316, 0.0
    %v546 = vsel %vm318, %v514, 0.0
    %v547 = vsel %vm318, %v515, 0.0
    %v548 = vadd.f32 %v546, %v547
    %v549 = vsel %vm318, %v516, 0.0
    %v550 = vadd.f32 %v548, %v549
    %v551 = vsel %vm318, %v517, 0.0
    %v552 = vadd.f32 %v550, %v551
    %v553 = vsel %vm318, %v518, 0.0
    %v554 = vadd.f32 %v552, %v553
    %v555 = vsel %vm318, %v519, 0.0
    %v556 = vadd.f32 %v554, %v555
    %v557 = vsel %vm318, %v520, 0.0
    %v558 = vadd.f32 %v556, %v557
    %v559 = vsel %vm318, %v521, 0.0
    %v560 = vadd.f32 %v558, %v559
    %v561 = vsel %vm318, %v522, 0.0
    %v562 = vadd.f32 %v560, %v561
    %v563 = vsel %vm318, %v523, 0.0
    %v564 = vadd.f32 %v562, %v563
    %v565 = vsel %vm318, %v524, 0.0
    %v566 = vadd.f32 %v564, %v565
    %v567 = vsel %vm318, %v525, 0.0
    %v568 = vadd.f32 %v566, %v567
    %v569 = vsel %vm318, %v526, 0.0
    %v570 = vadd.f32 %v568, %v569
    %v571 = vsel %vm318, %v527, 0.0
    %v572 = vadd.f32 %v570, %v571
    %v573 = vsel %vm318, %v528, 0.0
    %v574 = vadd.f32 %v572, %v573
    %v575 = vsel %vm318, %v529, 0.0
    %v576 = vadd.f32 %v574, %v575
    %v577 = vsel %vm318, %v530, 0.0
    %v578 = vadd.f32 %v576, %v577
    %v579 = vsel %vm318, %v531, 0.0
    %v580 = vadd.f32 %v578, %v579
    %v581 = vsel %vm318, %v532, 0.0
    %v582 = vadd.f32 %v580, %v581
    %v583 = vsel %vm318, %v533, 0.0
    %v584 = vadd.f32 %v582, %v583
    %v585 = vsel %vm318, %v534, 0.0
    %v586 = vadd.f32 %v584, %v585
    %v587 = vsel %vm318, %v535, 0.0
    %v588 = vadd.f32 %v586, %v587
    %v589 = vsel %vm318, %v536, 0.0
    %v590 = vadd.f32 %v588, %v589
    %v591 = vsel %vm318, %v537, 0.0
    %v592 = vadd.f32 %v590, %v591
    %v593 = vsel %vm318, %v538, 0.0
    %v594 = vadd.f32 %v592, %v593
    %v595 = vsel %vm318, %v539, 0.0
    %v596 = vadd.f32 %v594, %v595
    %v597 = vsel %vm318, %v540, 0.0
    %v598 = vadd.f32 %v596, %v597
    %v599 = vsel %vm318, %v541, 0.0
    %v600 = vadd.f32 %v598, %v599
    %v601 = vsel %vm318, %v542, 0.0
    %v602 = vadd.f32 %v600, %v601
    %v603 = vsel %vm318, %v543, 0.0
    %v604 = vadd.f32 %v602, %v603
    %v605 = vsel %vm318, %v544, 0.0
    %v606 = vadd.f32 %v604, %v605
    %v607 = vsel %vm318, %v545, 0.0
    %v608 = vadd.f32 %v606, %v607
    %v609 = vrot.slane %v608, 4
    %v610 = vadd.f32 %v608, %v609
    %v611 = vrot.slane %v610, 2
    %v612 = vadd.f32 %v610, %v611
    %v613 = vrot.slane %v612, 1
    %v614 = vadd.f32 %v612, %v613
    %vm615 = vcmask 253952
    %616 = vst.msk [vmem:[%s4] sm:$0x1] %vm615, %v614
    %v617 = vmul.f32 %v514, %v514
    %v618 = vmul.f32 %v515, %v515
    %v619 = vmul.f32 %v516, %v516
    %v620 = vmul.f32 %v517, %v517
    %v621 = vmul.f32 %v518, %v518
    %v622 = vmul.f32 %v519, %v519
    %v623 = vmul.f32 %v520, %v520
    %v624 = vmul.f32 %v521, %v521
    %v625 = vmul.f32 %v522, %v522
    %v626 = vmul.f32 %v523, %v523
    %v627 = vmul.f32 %v524, %v524
    %v628 = vmul.f32 %v525, %v525
    %v629 = vmul.f32 %v526, %v526
    %v630 = vmul.f32 %v527, %v527
    %v631 = vmul.f32 %v528, %v528
    %v632 = vmul.f32 %v529, %v529
    %v633 = vmul.f32 %v530, %v530
    %v634 = vmul.f32 %v531, %v531
    %v635 = vmul.f32 %v532, %v532
    %v636 = vmul.f32 %v533, %v533
    %v637 = vmul.f32 %v534, %v534
    %v638 = vmul.f32 %v535, %v535
    %v639 = vmul.f32 %v536, %v536
    %v640 = vmul.f32 %v537, %v537
    %v641 = vmul.f32 %v538, %v538
    %v642 = vmul.f32 %v539, %v539
    %v643 = vmul.f32 %v540, %v540
    %v644 = vmul.f32 %v541, %v541
    %v645 = vmul.f32 %v542, %v542
    %v646 = vmul.f32 %v543, %v543
    %v647 = vmul.f32 %v544, %v544
    %v648 = vmul.f32 %v545, %v545
    %v649 = vsel %vm318, %v617, 0.0
    %v650 = vsel %vm318, %v618, 0.0
    %v651 = vadd.f32 %v649, %v650
    %v652 = vsel %vm318, %v619, 0.0
    %v653 = vadd.f32 %v651, %v652
    %v654 = vsel %vm318, %v620, 0.0
    %v655 = vadd.f32 %v653, %v654
    %v656 = vsel %vm318, %v621, 0.0
    %v657 = vadd.f32 %v655, %v656
    %v658 = vsel %vm318, %v622, 0.0
    %v659 = vadd.f32 %v657, %v658
    %v660 = vsel %vm318, %v623, 0.0
    %v661 = vadd.f32 %v659, %v660
    %v662 = vsel %vm318, %v624, 0.0
    %v663 = vadd.f32 %v661, %v662
    %v664 = vsel %vm318, %v625, 0.0
    %v665 = vadd.f32 %v663, %v664
    %v666 = vsel %vm318, %v626, 0.0
    %v667 = vadd.f32 %v665, %v666
    %v668 = vsel %vm318, %v627, 0.0
    %v669 = vadd.f32 %v667, %v668
    %v670 = vsel %vm318, %v628, 0.0
    %v671 = vadd.f32 %v669, %v670
    %v672 = vsel %vm318, %v629, 0.0
    %v673 = vadd.f32 %v671, %v672
    %v674 = vsel %vm318, %v630, 0.0
    %v675 = vadd.f32 %v673, %v674
    %v676 = vsel %vm318, %v631, 0.0
    %v677 = vadd.f32 %v675, %v676
    %v678 = vsel %vm318, %v632, 0.0
    %v679 = vadd.f32 %v677, %v678
    %v680 = vsel %vm318, %v633, 0.0
    %v681 = vadd.f32 %v679, %v680
    %v682 = vsel %vm318, %v634, 0.0
    %v683 = vadd.f32 %v681, %v682
    %v684 = vsel %vm318, %v635, 0.0
    %v685 = vadd.f32 %v683, %v684
    %v686 = vsel %vm318, %v636, 0.0
    %v687 = vadd.f32 %v685, %v686
    %v688 = vsel %vm318, %v637, 0.0
    %v689 = vadd.f32 %v687, %v688
    %v690 = vsel %vm318, %v638, 0.0
    %v691 = vadd.f32 %v689, %v690
    %v692 = vsel %vm318, %v639, 0.0
    %v693 = vadd.f32 %v691, %v692
    %v694 = vsel %vm318, %v640, 0.0
    %v695 = vadd.f32 %v693, %v694
    %v696 = vsel %vm318, %v641, 0.0
    %v697 = vadd.f32 %v695, %v696
    %v698 = vsel %vm318, %v642, 0.0
    %v699 = vadd.f32 %v697, %v698
    %v700 = vsel %vm318, %v643, 0.0
    %v701 = vadd.f32 %v699, %v700
    %v702 = vsel %vm318, %v644, 0.0
    %v703 = vadd.f32 %v701, %v702
    %v704 = vsel %vm318, %v645, 0.0
    %v705 = vadd.f32 %v703, %v704
    %v706 = vsel %vm318, %v646, 0.0
    %v707 = vadd.f32 %v705, %v706
    %v708 = vsel %vm318, %v647, 0.0
    %v709 = vadd.f32 %v707, %v708
    %v710 = vsel %vm318, %v648, 0.0
    %v711 = vadd.f32 %v709, %v710
    %v712 = vrot.slane %v711, 4
    %v713 = vadd.f32 %v711, %v712
    %v714 = vrot.slane %v713, 2
    %v715 = vadd.f32 %v713, %v714
    %v716 = vrot.slane %v715, 1
    %v717 = vadd.f32 %v715, %v716
    %718 = vst.msk [vmem:[%s4 + $0x1] sm:$0x1] %vm615, %v717
    %vm719 = vcmask 259072
    %720 = vst.msk [vmem:[%s4 + $0x2] sm:$0x3f] %vm719, 0.0
    // Predicated region
    $region14: #{conv2d_p.1} parent=1 // pred_check
      _
    $region15: #{conv2d_p.1} parent=1 // pred_check_branch
      %722 = sbr.rel (0) target = $region17
    $region16: #{conv2d_p.1} parent=1 // pred_region
      %724 = vsyncadd [#allocation3], 0
      %s725 = sshll.u32 [#allocation2], 4
      %s726 = int_to_ptr.vmem [resolvable:$true] %s725
      %s727 = sshll.u32 %s3, 4
      %s728 = int_to_ptr.hbm [resolvable:$true] %s727
      %733 = dma.vmem_to_hbm [thread:$0]  %s726, 4096, %s728, [#allocation3], 128, 128, 8
    $region17: #{conv2d_p.1} parent=1 // pred_fallthru
      _
    // Predicated region
    $region18: #{conv2d_p.1} parent=1 // pred_check
      _
    $region19: #{conv2d_p.1} parent=1 // pred_check_branch
      %735 = sbr.rel (0) target = $region21
    $region20: #{conv2d_p.1} parent=1 // pred_region
      _
    $region21: #{conv2d_p.1} parent=1 // pred_fallthru
      _
    // Predicated region
    $region22: #{conv2d_p.1} parent=1 // pred_check
      _
    $region23: #{conv2d_p.1} parent=1 // pred_check_branch
      %737 = sbr.rel (0) target = $region25
    $region24: #{conv2d_p.1} parent=1 // pred_region
      %739 = dma.done [#allocation3], 4096
    $region25: #{conv2d_p.1} parent=1 // pred_fallthru
      _
    // Predicated region
    $region26: #{conv2d_p.1} parent=1 // pred_check
      _
    $region27: #{conv2d_p.1} parent=1 // pred_check_branch
      %741 = sbr.rel (0) target = $region29
    $region28: #{conv2d_p.1} parent=1 // pred_region
      _
    $region29: #{conv2d_p.1} parent=1 // pred_fallthru
      _
    %742 = vsyncpa [#allocation3], 1

</llo_original>
